<compile_context>
chip_gen: v5e
topology: v5e:2x2
jax: 0.10.0
libtpu: 0.0.40
codegen_flags: <defaults>
</compile_context>

<pallas_src>
import functools

import jax
import jax.numpy as jnp
from jax import lax
from jax.experimental import pallas as pl
from jax.experimental.pallas import tpu as pltpu


def mha_core_kernel(q_ref, k_ref, v_ref, wo_ref, out_ref, *, heads):
    """One (batch, query-tile) grid step: attention core + Wo projection.

    Shapes seen inside the kernel (batch dim squeezed by the BlockSpecs):
      q_ref  : (H, tq,  dk) bf16   projected queries (1/sqrt(dk) pre-folded)
      k_ref  : (H, Skv, dk) bf16   projected keys of this batch element
      v_ref  : (H, Skv, dk) bf16   projected values
      wo_ref : (H, dk,  D)  bf16   per-head row-slice of Wo
      out_ref: (tq, D)      f32    Wo-projected multi-head output
    """

    def head_body(h, acc):
        qh = q_ref[h]                                   # (tq, dk)  bf16
        kh = k_ref[h]                                   # (Skv, dk) bf16
        vh = v_ref[h]                                   # (Skv, dk) bf16

        # scores = q @ k^T expressed as a contraction (no explicit transpose).
        s = jnp.einsum('qd,kd->qk', qh, kh,
                       preferred_element_type=jnp.float32)           # (tq, Skv) f32

        # TODO(synk): attention mask (masked_fill(mask == 0, -inf)) not wired;
        # this reproduces the module's default mask=None path.

        # Numerically stable softmax in f32; normalisation is deferred until
        # after the PV matmul so the multiply is on (tq, dk), not (tq, Skv).
        m = jnp.max(s, axis=-1, keepdims=True)
        p = jnp.exp(s - m)
        denom = jnp.sum(p, axis=-1, keepdims=True)

        ctx = jnp.dot(p.astype(jnp.bfloat16), vh,
                      preferred_element_type=jnp.float32)            # (tq, dk)
        ctx = ctx * pl.reciprocal(denom, approx=True)                # EUP slot

        # Accumulate this head's contribution through its Wo row-slice
        # (replaces the concat-then-project of the PyTorch module).
        return acc + jnp.dot(ctx.astype(jnp.bfloat16), wo_ref[h],
                             preferred_element_type=jnp.float32)     # (tq, D)

    acc = lax.fori_loop(0, heads, head_body,
                        jnp.zeros(out_ref.shape, jnp.float32))
    out_ref[...] = acc.astype(out_ref.dtype)


def _pick_query_tile(seq_len, target=512):
    """Query-tile size: whole sequence when small, else the largest
    sublane-aligned divisor of seq_len that is <= target."""
    if seq_len <= target:
        return seq_len
    for t in range(target, 7, -1):
        if seq_len % t == 0 and t % 8 == 0:
            return t
    # TODO(synk): masked tail tile for ragged Sq instead of falling back to
    # a single whole-sequence tile.
    return seq_len


def multi_head_attention(queries, keys, values, params, heads):
    """Forward pass of MultiHeadAttention (eval mode, mask=None).

    params: "wq"/"wk"/"wv" of shape (heads, D, dk) and "wo" of shape (D, D),
    all in (in_features, out_features) layout (transpose of torch
    Linear.weight).  Returns the (B, Sq, D) multi-head result.
    """
    B, Sq, D = queries.shape
    _, Skv, _ = keys.shape
    assert D % heads == 0, "heads must divide d_model"
    dk = D // heads
    scale = 1.0 / float(dk) ** 0.5
    bf16 = jnp.bfloat16

    # ---- Hoisted projections (perf review): one full-width XLA GEMM per
    # tensor instead of per-head (N=dk) matmuls redone for every query tile.
    # 1/sqrt(dk) is folded into Wq here (a weight-sized op, not an activation
    # pre-scale), so no in-kernel score scaling is needed.
    wq_scaled = params["wq"].astype(jnp.float32) * jnp.float32(scale)   # (H, D, dk)
    qp = jnp.einsum('bsd,hdk->bhsk', queries, wq_scaled).astype(bf16)   # (B, H, Sq, dk)
    kp = jnp.einsum('bsd,hdk->bhsk', keys, params["wk"]).astype(bf16)   # (B, H, Skv, dk)
    vp = jnp.einsum('bsd,hdk->bhsk', values, params["wv"]).astype(bf16)
    wo3 = params["wo"].reshape(heads, dk, D).astype(bf16)               # rows h*dk:(h+1)*dk

    tq = _pick_query_tile(Sq)
    nqt = Sq // tq
    grid = (B, nqt)

    # K/V block index depends only on the batch axis: when there are several
    # query tiles per batch element, single-buffer them to halve their VMEM
    # footprint (important under v7x's 64 MiB VMEM).
    def kv_spec():
        kwargs = {}
        if nqt > 1:
            kwargs["pipeline_mode"] = pl.Buffered(1)
        return pl.BlockSpec((None, heads, Skv, dk),
                            lambda b, t: (b, 0, 0, 0), **kwargs)

    # Grid-invariant weight -> single buffered.
    wo_spec = pl.BlockSpec((heads, dk, D), lambda b, t: (0, 0, 0),
                           pipeline_mode=pl.Buffered(1))

    # Rough per-step VMEM footprint -> raise the scoped limit past the 32 MiB
    # default, but cap at 64 MiB so the same setting remains valid on v7x.
    kv_bufs = 1 if nqt > 1 else 2
    est_vmem = (2 * heads * tq * dk * 2            # Q tile, double-buffered, bf16
                + 2 * kv_bufs * heads * Skv * dk * 2  # K + V
                + heads * dk * D * 2               # Wo, single-buffered
                + 2 * tq * D * 4                   # output tile, double-buffered
                + tq * Skv * 4 + tq * D * 4)       # score / accumulator temporaries
    vmem_limit = int(min(max(2 * est_vmem, 32 * 1024 * 1024), 64 * 1024 * 1024))

    # Cost estimate for the pallas_call only (projections now run in XLA);
    # K/V DMAs are deduped across query tiles by Pallas, so counted once.
    flops = 4 * B * heads * Sq * Skv * dk + 2 * B * Sq * D * D
    transcendentals = B * heads * Sq * Skv
    bytes_accessed = (B * Sq * D * 2          # projected queries (bf16)
                      + 2 * B * Skv * D * 2   # projected keys + values (bf16)
                      + D * D * 2             # Wo (bf16)
                      + B * Sq * D * 4)       # output (f32)

    kernel = functools.partial(mha_core_kernel, heads=heads)

    return pl.pallas_call(
        kernel,
        out_shape=jax.ShapeDtypeStruct((B, Sq, D), queries.dtype),
        grid_spec=pltpu.PrefetchScalarGridSpec(
            num_scalar_prefetch=0,
            grid=grid,
            in_specs=[
                pl.BlockSpec((None, heads, tq, dk),
                             lambda b, t: (b, 0, t, 0)),              # Q (projected)
                kv_spec(),                                            # K (projected)
                kv_spec(),                                            # V (projected)
                wo_spec,                                              # Wo stack
            ],
            out_specs=pl.BlockSpec((None, tq, D), lambda b, t: (b, t, 0)),
        ),
        compiler_params=pltpu.CompilerParams(
            dimension_semantics=("parallel", "parallel"),
            vmem_limit_bytes=vmem_limit,
        ),
        cost_estimate=pl.CostEstimate(
            flops=flops,
            transcendentals=transcendentals,
            bytes_accessed=bytes_accessed),
    )(qp, kp, vp, wo3)


def multi_head_attention_ref(queries, keys, values, params, heads):
    """Pure-JAX reference mirroring the PyTorch forward (eval, mask=None)."""
    D = queries.shape[-1]
    dk = D // heads
    outs = []
    for h in range(heads):
        q = queries @ params["wq"][h]
        k = keys @ params["wk"][h]
        v = values @ params["wv"][h]
        attn = jax.nn.softmax(
            jnp.einsum('...qd,...kd->...qk', q, k) / jnp.sqrt(jnp.float32(dk)),
            axis=-1)
        outs.append(jnp.einsum('...qk,...kd->...qd', attn, v))
    return jnp.concatenate(outs, axis=-1) @ params["wo"]


if __name__ == "__main__":
    B, S, D, H = 2, 8, 32, 4
    dk = D // H

    key = jax.random.PRNGKey(0)
    ks = jax.random.split(key, 5)
    f32 = jnp.float32
    params = {
        "wq": 0.05 * jax.random.normal(ks[0], (H, D, dk), f32),
        "wk": 0.05 * jax.random.normal(ks[1], (H, D, dk), f32),
        "wv": 0.05 * jax.random.normal(ks[2], (H, D, dk), f32),
        "wo": 0.05 * jax.random.normal(ks[3], (D, D), f32),
    }
    x = jax.random.normal(ks[4], (B, S, D), f32)

    # Self-attention: queries = keys = values = x (module allows distinct ones).
    out = multi_head_attention(x, x, x, params, heads=H)
    out = jax.block_until_ready(out)

    ref = multi_head_attention_ref(x, x, x, params, heads=H)
    assert out.shape == (B, S, D)
    # bf16 MXU operands + approx reciprocal -> looser tolerance than pure f32.
    assert jnp.allclose(out, ref, atol=2e-2, rtol=2e-2), "mismatch vs reference"
    print("KERNEL_OK")
</pallas_src>

<mosaic_0001>
module attributes {stable_mosaic.version = 11 : i64} {
  func.func @mha_core_kernel(%arg0: i32, %arg1: i32, %arg2: memref<1x4x8x8xbf16, #tpu.memory_space<vmem>>, %arg3: memref<1x4x8x8xbf16, #tpu.memory_space<vmem>>, %arg4: memref<1x4x8x8xbf16, #tpu.memory_space<vmem>>, %arg5: memref<4x8x32xbf16, #tpu.memory_space<vmem>>, %arg6: memref<1x8x32xf32, #tpu.memory_space<vmem>>) attributes {dimension_semantics = [#tpu.dimension_semantics<parallel>, #tpu.dimension_semantics<parallel>], iteration_bounds = array<i64: 2, 1>, scalar_prefetch = 0 : i64, scratch_operands = 0 : i64, tpu.core_type = #tpu.core_type<tc>, window_params = [{transform_indices = @transform_0, window_bounds = array<i64: 1, 4, 8, 8>}, {transform_indices = @transform_1, window_bounds = array<i64: 1, 4, 8, 8>}, {transform_indices = @transform_2, window_bounds = array<i64: 1, 4, 8, 8>}, {pipeline_mode = #tpu.pipeline_mode<synchronous>, transform_indices = @transform_3, window_bounds = array<i64: 4, 8, 32>}, {transform_indices = @transform_4, window_bounds = array<i64: 1, 8, 32>}]} {
    %cst = arith.constant 0.000000e+00 : f32
    %0 = vector.broadcast %cst : f32 to vector<8x32xf32>
    %c0_i32 = arith.constant 0 : i32
    %c4_i32 = arith.constant 4 : i32
    %1 = arith.addi %c0_i32, %c4_i32 : i32
    %c1_i32 = arith.constant 1 : i32
    %2 = scf.for %arg7 = %c0_i32 to %1 step %c1_i32 iter_args(%arg8 = %0) -> (vector<8x32xf32>)  : i32 {
      %c0_3 = arith.constant 0 : index
      %6 = arith.index_cast %arg7 : i32 to index
      %c0_4 = arith.constant 0 : index
      %c0_5 = arith.constant 0 : index
      %7 = vector.load %arg2[%c0_3, %6, %c0_4, %c0_5] : memref<1x4x8x8xbf16, #tpu.memory_space<vmem>>, vector<1x1x8x8xbf16>
      %8 = vector.shape_cast %7 : vector<1x1x8x8xbf16> to vector<8x8xbf16>
      %c0_6 = arith.constant 0 : index
      %9 = arith.index_cast %arg7 : i32 to index
      %c0_7 = arith.constant 0 : index
      %c0_8 = arith.constant 0 : index
      %10 = vector.load %arg3[%c0_6, %9, %c0_7, %c0_8] : memref<1x4x8x8xbf16, #tpu.memory_space<vmem>>, vector<1x1x8x8xbf16>
      %11 = vector.shape_cast %10 : vector<1x1x8x8xbf16> to vector<8x8xbf16>
      %c0_9 = arith.constant 0 : index
      %12 = arith.index_cast %arg7 : i32 to index
      %c0_10 = arith.constant 0 : index
      %c0_11 = arith.constant 0 : index
      %13 = vector.load %arg4[%c0_9, %12, %c0_10, %c0_11] : memref<1x4x8x8xbf16, #tpu.memory_space<vmem>>, vector<1x1x8x8xbf16>
      %14 = vector.shape_cast %13 : vector<1x1x8x8xbf16> to vector<8x8xbf16>
      "tpu.trace_start"() <{level = 10 : i32, message = "qd,kd->qk"}> : () -> ()
      %cst_12 = arith.constant dense<0.000000e+00> : vector<8x8xf32>
      %15 = tpu.matmul %8, %11, %cst_12 {dimension_numbers = #tpu.dot_dimension_numbers<[1], [1], [0], [0], [0, 0, 1, 0], [], []>} : vector<8x8xbf16>, vector<8x8xbf16>, vector<8x8xf32> -> vector<8x8xf32>
      "tpu.trace_stop"() : () -> ()
      %cst_13 = arith.constant dense<0xFF800000> : vector<8xf32>
      %16 = vector.multi_reduction <maximumf>, %15, %cst_13 [1] : vector<8x8xf32> to vector<8xf32>
      %17 = vector.shape_cast %16 : vector<8xf32> to vector<8x1xf32>
      %18 = vector.broadcast %17 : vector<8x1xf32> to vector<8x8xf32>
      %19 = arith.subf %15, %18 : vector<8x8xf32>
      %20 = math.exp %19 : vector<8x8xf32>
      %cst_14 = arith.constant dense<0.000000e+00> : vector<8xf32>
      %21 = vector.multi_reduction <add>, %20, %cst_14 [1] : vector<8x8xf32> to vector<8xf32>
      %22 = vector.shape_cast %21 : vector<8xf32> to vector<8x1xf32>
      %23 = arith.truncf %20 : vector<8x8xf32> to vector<8x8xbf16>
      %cst_15 = arith.constant dense<0.000000e+00> : vector<8x8xf32>
      %24 = tpu.matmul %23, %14, %cst_15 {dimension_numbers = #tpu.dot_dimension_numbers<[1], [0], [0], [1], [0, 0, 1, 1], [], []>} : vector<8x8xbf16>, vector<8x8xbf16>, vector<8x8xf32> -> vector<8x8xf32>
      %25 = tpu.reciprocal %22 {approx = true} : vector<8x1xf32> -> vector<8x1xf32>
      %26 = vector.broadcast %25 : vector<8x1xf32> to vector<8x8xf32>
      %27 = arith.mulf %24, %26 : vector<8x8xf32>
      %28 = arith.truncf %27 : vector<8x8xf32> to vector<8x8xbf16>
      %29 = arith.index_cast %arg7 : i32 to index
      %c0_16 = arith.constant 0 : index
      %c0_17 = arith.constant 0 : index
      %30 = vector.load %arg5[%29, %c0_16, %c0_17] : memref<4x8x32xbf16, #tpu.memory_space<vmem>>, vector<1x8x32xbf16>
      %31 = vector.shape_cast %30 : vector<1x8x32xbf16> to vector<8x32xbf16>
      %cst_18 = arith.constant dense<0.000000e+00> : vector<8x32xf32>
      %32 = tpu.matmul %28, %31, %cst_18 {dimension_numbers = #tpu.dot_dimension_numbers<[1], [0], [0], [1], [0, 0, 1, 1], [], []>} : vector<8x8xbf16>, vector<8x32xbf16>, vector<8x32xf32> -> vector<8x32xf32>
      %33 = arith.addf %arg8, %32 : vector<8x32xf32>
      scf.yield %33 : vector<8x32xf32>
    }
    %c4_i32_0 = arith.constant 4 : i32
    %c0 = arith.constant 0 : index
    %c0_1 = arith.constant 0 : index
    %c0_2 = arith.constant 0 : index
    %3 = vector.load %arg6[%c0, %c0_1, %c0_2] : memref<1x8x32xf32, #tpu.memory_space<vmem>>, vector<1x8x32xf32>
    %4 = vector.shape_cast %3 : vector<1x8x32xf32> to vector<8x32xf32>
    %5 = vector.shape_cast %2 : vector<8x32xf32> to vector<1x8x32xf32>
    tpu.vector_store %arg6[%c0, %c0_1, %c0_2], %5 {strides = array<i32>} : memref<1x8x32xf32, #tpu.memory_space<vmem>>, vector<1x8x32xf32>,
    return
  }
  func.func @transform_0(%arg0: i32, %arg1: i32) -> (i32, i32, i32, i32) {
    %c0_i32 = arith.constant 0 : i32
    %c0_i32_0 = arith.constant 0 : i32
    %c0_i32_1 = arith.constant 0 : i32
    return %arg0, %c0_i32, %arg1, %c0_i32_0 : i32, i32, i32, i32
  }
  func.func @transform_1(%arg0: i32, %arg1: i32) -> (i32, i32, i32, i32) {
    %c0_i32 = arith.constant 0 : i32
    %c0_i32_0 = arith.constant 0 : i32
    %c0_i32_1 = arith.constant 0 : i32
    %c0_i32_2 = arith.constant 0 : i32
    return %arg0, %c0_i32, %c0_i32_0, %c0_i32_1 : i32, i32, i32, i32
  }
  func.func @transform_2(%arg0: i32, %arg1: i32) -> (i32, i32, i32, i32) {
    %c0_i32 = arith.constant 0 : i32
    %c0_i32_0 = arith.constant 0 : i32
    %c0_i32_1 = arith.constant 0 : i32
    %c0_i32_2 = arith.constant 0 : i32
    return %arg0, %c0_i32, %c0_i32_0, %c0_i32_1 : i32, i32, i32, i32
  }
  func.func @transform_3(%arg0: i32, %arg1: i32) -> (i32, i32, i32) {
    %c0_i32 = arith.constant 0 : i32
    %c0_i32_0 = arith.constant 0 : i32
    %c0_i32_1 = arith.constant 0 : i32
    %c0_i32_2 = arith.constant 0 : i32
    return %c0_i32, %c0_i32_0, %c0_i32_1 : i32, i32, i32
  }
  func.func @transform_4(%arg0: i32, %arg1: i32) -> (i32, i32, i32) {
    %c0_i32 = arith.constant 0 : i32
    %c0_i32_0 = arith.constant 0 : i32
    return %arg0, %arg1, %c0_i32 : i32, i32, i32
  }
}

</mosaic_0001>

<llo_original>
// kernel: tpu_custom_call.1
$region0: #{tpu_custom_call.1}
  #allocation0 [shape = 'u32[]', space=smem, size = 0x4, offset = 0x4, fixed_abs, tag = 'smem constant byte address 0x4 - core index']
  #allocation1 [shape = 'u32[72,128]{1,0:T(1,128)}', space=vmem, size = 0x9000, scoped, tag = 'internal scratch']
  %s0 = inlined_call_operand.hbm [shape: bf16[2,4,8,8], index: 0, kind: input, shape index: {}]
  %s1 = inlined_call_operand.hbm [shape: bf16[2,4,8,8], index: 1, kind: input, shape index: {}]
  %s2 = inlined_call_operand.hbm [shape: bf16[2,4,8,8], index: 2, kind: input, shape index: {}]
  %s3 = inlined_call_operand.hbm [shape: bf16[4,8,32], index: 3, kind: input, shape index: {}]
  %s4 = inlined_call_operand.hbm [shape: f32[2,8,32], index: 4, kind: output, shape index: {}]
  %s5 = sld [smem:[#allocation0]]
  $region72: #{tpu_custom_call.1} parent=0
    _
  %s7 = ssub.s32 1, %s5
  %s8 = scalar_select 0, %s7, %s5
  $region1: #{tpu_custom_call.1} parent=0
    #allocation2 [shape = 'u8[16384]{0}', space=vmem, size = 0x4000, scoped, tag = 'input window, operand 0']
    #allocation3 [shape = 's32[2]{0}', space=sflag, size = 0x8, scoped, tag = 'scoped memory for tpu_custom_call.1']
    #allocation4 [shape = 's32[2]{0}', space=sflag, size = 0x8, scoped, tag = 'scoped memory for tpu_custom_call.1']
    #allocation5 [shape = 'u8[16384]{0}', space=vmem, size = 0x4000, scoped, tag = 'input window, operand 1']
    #allocation6 [shape = 's32[2]{0}', space=sflag, size = 0x8, scoped, tag = 'scoped memory for tpu_custom_call.1']
    #allocation7 [shape = 'u8[16384]{0}', space=vmem, size = 0x4000, scoped, tag = 'input window, operand 2']
    #allocation8 [shape = 'u8[8192]{0}', space=vmem, size = 0x2000, scoped, tag = 'input window, operand 3, single buffered']
    #allocation9 [shape = 's32[1]{0}', space=sflag, size = 0x4, scoped, tag = 'scoped memory for tpu_custom_call.1']
    #allocation10 [shape = 'u8[8192]{0}', space=vmem, size = 0x2000, scoped, tag = 'output window, operand 0']
    %9 = vsyncpa [#allocation3], 0
    %s10 = scalar_lea.sflag [#allocation3], 1
    %11 = vsyncpa %s10, 0
    %12 = vsyncpa [#allocation6], 0
    %s13 = scalar_lea.sflag [#allocation6], 1
    %14 = vsyncpa %s13, 0
    %15 = vsyncpa [#allocation9], 0
    %16 = vsyncpa [#allocation4], 0
    %s17 = scalar_lea.sflag [#allocation4], 1
    %18 = vsyncpa %s17, 0
    loop: start=0, step=1, limit=4
    $region2: #{tpu_custom_call.1} parent=1 // loop_pre_header
      _
    $region3: #{tpu_custom_call.1} parent=1 // loop_header
      %s20 = sphi 0, %s24
      %p21 = scmp.ge.s32.totalorder %s20, 4
      %s27 = sphi 0, %s39
      %s28 = sphi 0, %s35
      %s29 = sphi 0, %s27
      %s30 = sphi 0, %s28
      %s31 = sphi 0, %s29
      %s32 = sphi 0, %s30
      %s44 = sphi 0, %s46
      %s47 = sphi 0, %s44
      %s48 = sphi 0, %s47
      %s64 = sphi 0, %s48
      %s70 = sphi 0, %s72
      %s73 = sphi 0, %s70
      %s74 = sphi 0, %s73
      %s90 = sphi 0, %s74
      %s96 = sphi 0, %s98
      %s99 = sphi 0, %s96
      %s100 = sphi 0, %s99
      %s116 = sphi 0, %s100
      %s120 = sphi 0, %s120
      %s122 = sphi 0, %s120
      %s123 = sphi 0, %s122
      %s137 = sphi 0, %s123
      %s145 = sphi 0, %s147
      %s148 = sphi 0, %s145
      %s149 = sphi 0, %s148
      %s165 = sphi 0, %s149
    $region4: #{tpu_custom_call.1} parent=1 // loop_header_branch
      %23 = sbr.rel (%p21) target = $region8
    $region5: #{tpu_custom_call.1} parent=1 // loop_body
      %s25 = ssub.s32 %s20, 1
      %s26 = ssub.s32 %s20, 2
      %s33 = sadd.s32 1, %s28
      %p34 = scmp.ge.s32.totalorder %s33, 1
      %s35 = scalar_select %p34, 0, %s33
      %s36 = sadd.s32 1, %s27
      %s37 = scalar_select %p34, %s36, %s27
      %p38 = scmp.ge.s32.totalorder %s37, 2
      %s39 = scalar_select %p38, 0, %s37
      %s40 = ssub.s32 %s27, %s39
      %s41 = ssub.s32 %s28, %s35
      %s42 = sor.u32 %s40, %s41
      %p43 = scmp.eq.s32.totalorder %s42, 0
      %s45 = sadd.s32 %s44, 1
      %s46 = scalar_select %p43, %s44, %s45
      %p49 = pneg %p43
      %p50 = scmp.eq.s32.totalorder %s20, 1
      %p51 = por %p49, %p50
      %p52 = scmp.ne.s32.totalorder %s44, %s47
      %p53 = scmp.eq.s32.totalorder %s20, 0
      %p54 = por %p52, %p53
      %p55 = scmp.ne.s32.totalorder %s44, %s47
      %p56 = scmp.eq.s32.totalorder %s25, 1
      %p57 = por %p55, %p56
      %p58 = scmp.ne.s32.totalorder %s47, %s48
      %p59 = scmp.eq.s32.totalorder %s25, 0
      %p60 = por %p58, %p59
      %p61 = scmp.ne.s32.totalorder %s47, %s48
      %p62 = scmp.eq.s32.totalorder %s26, 1
      %p63 = por %p61, %p62
      %p65 = scmp.ne.s32.totalorder %s48, %s64
      %p66 = scmp.eq.s32.totalorder %s26, 0
      %p67 = por %p65, %p66
      %s68 = ssub.s32 %s27, %s39
      %p69 = scmp.eq.s32.totalorder %s68, 0
      %s71 = sadd.s32 %s70, 1
      %s72 = scalar_select %p69, %s70, %s71
      %p75 = pneg %p69
      %p76 = scmp.eq.s32.totalorder %s20, 1
      %p77 = por %p75, %p76
      %p78 = scmp.ne.s32.totalorder %s70, %s73
      %p79 = scmp.eq.s32.totalorder %s20, 0
      %p80 = por %p78, %p79
      %p81 = scmp.ne.s32.totalorder %s70, %s73
      %p82 = scmp.eq.s32.totalorder %s25, 1
      %p83 = por %p81, %p82
      %p84 = scmp.ne.s32.totalorder %s73, %s74
      %p85 = scmp.eq.s32.totalorder %s25, 0
      %p86 = por %p84, %p85
      %p87 = scmp.ne.s32.totalorder %s73, %s74
      %p88 = scmp.eq.s32.totalorder %s26, 1
      %p89 = por %p87, %p88
      %p91 = scmp.ne.s32.totalorder %s74, %s90
      %p92 = scmp.eq.s32.totalorder %s26, 0
      %p93 = por %p91, %p92
      %s94 = ssub.s32 %s27, %s39
      %p95 = scmp.eq.s32.totalorder %s94, 0
      %s97 = sadd.s32 %s96, 1
      %s98 = scalar_select %p95, %s96, %s97
      %p101 = pneg %p95
      %p102 = scmp.eq.s32.totalorder %s20, 1
      %p103 = por %p101, %p102
      %p104 = scmp.ne.s32.totalorder %s96, %s99
      %p105 = scmp.eq.s32.totalorder %s20, 0
      %p106 = por %p104, %p105
      %p107 = scmp.ne.s32.totalorder %s96, %s99
      %p108 = scmp.eq.s32.totalorder %s25, 1
      %p109 = por %p107, %p108
      %p110 = scmp.ne.s32.totalorder %s99, %s100
      %p111 = scmp.eq.s32.totalorder %s25, 0
      %p112 = por %p110, %p111
      %p113 = scmp.ne.s32.totalorder %s99, %s100
      %p114 = scmp.eq.s32.totalorder %s26, 1
      %p115 = por %p113, %p114
      %p117 = scmp.ne.s32.totalorder %s100, %s116
      %p118 = scmp.eq.s32.totalorder %s26, 0
      %p119 = por %p117, %p118
      %s121 = sadd.s32 %s120, 1
      %p124 = scmp.eq.s32.totalorder %s20, 1
      %p125 = scmp.ne.s32.totalorder %s120, %s122
      %p126 = scmp.eq.s32.totalorder %s20, 0
      %p127 = por %p125, %p126
      %p128 = scmp.ne.s32.totalorder %s120, %s122
      %p129 = scmp.eq.s32.totalorder %s25, 1
      %p130 = por %p128, %p129
      %p131 = scmp.ne.s32.totalorder %s122, %s123
      %p132 = scmp.eq.s32.totalorder %s25, 0
      %p133 = por %p131, %p132
      %p134 = scmp.ne.s32.totalorder %s122, %s123
      %p135 = scmp.eq.s32.totalorder %s26, 1
      %p136 = por %p134, %p135
      %p138 = scmp.ne.s32.totalorder %s123, %s137
      %p139 = scmp.eq.s32.totalorder %s26, 0
      %p140 = por %p138, %p139
      %s141 = ssub.s32 %s27, %s39
      %s142 = ssub.s32 %s28, %s35
      %s143 = sor.u32 %s141, %s142
      %p144 = scmp.eq.s32.totalorder %s143, 0
      %s146 = sadd.s32 %s145, 1
      %s147 = scalar_select %p144, %s145, %s146
      %p150 = pneg %p144
      %p151 = scmp.eq.s32.totalorder %s20, 1
      %p152 = por %p150, %p151
      %p153 = scmp.ne.s32.totalorder %s145, %s148
      %p154 = scmp.eq.s32.totalorder %s20, 0
      %p155 = por %p153, %p154
      %p156 = scmp.ne.s32.totalorder %s145, %s148
      %p157 = scmp.eq.s32.totalorder %s25, 1
      %p158 = por %p156, %p157
      %p159 = scmp.ne.s32.totalorder %s148, %s149
      %p160 = scmp.eq.s32.totalorder %s25, 0
      %p161 = por %p159, %p160
      %p162 = scmp.ne.s32.totalorder %s148, %s149
      %p163 = scmp.eq.s32.totalorder %s26, 1
      %p164 = por %p162, %p163
      %p166 = scmp.ne.s32.totalorder %s149, %s165
      %p167 = scmp.eq.s32.totalorder %s26, 0
      %p168 = por %p166, %p167
      %p169 = scmp.le.s32.totalorder 1, %s20
      %p170 = scmp.lt.s32.totalorder %s20, 3
      %p171 = pnand %p169, %p170
      %p172 = pneg %p171
      // Predicated region
      $region9: #{tpu_custom_call.1} parent=5 // pred_check
        _
      $region10: #{tpu_custom_call.1} parent=5 // pred_check_branch
        %174 = sbr.rel (%p171) target = $region12
      $region11: #{tpu_custom_call.1} parent=5 // pred_region
        %s175 = ssub.s32 %s20, 1
        // Predicated region
        $region13: #{tpu_custom_call.1} parent=11 // pred_check
          %p176 = pneg %p133
        $region14: #{tpu_custom_call.1} parent=11 // pred_check_branch
          %178 = sbr.rel (%p176) target = $region16
        $region15: #{tpu_custom_call.1} parent=11 // pred_region
          %180 = vsyncadd [#allocation9], 0
          %s181 = sshll.u32 %s3, 4
          %s182 = int_to_ptr.hbm [resolvable:$true] %s181
          %s183 = sshll.u32 [#allocation8], 4
          %s184 = int_to_ptr.vmem [resolvable:$true] %s183
          %189 = dma.hbm_to_vmem [thread:$0]  %s182, 256, %s184, [#allocation9], 64, 64, 4
        $region16: #{tpu_custom_call.1} parent=11 // pred_fallthru
          _
      $region12: #{tpu_custom_call.1} parent=5 // pred_fallthru
        _
      %p190 = scmp.lt.s32.totalorder %s20, 2
      // Predicated region
      $region17: #{tpu_custom_call.1} parent=5 // pred_check
        %p191 = pneg %p190
      $region18: #{tpu_custom_call.1} parent=5 // pred_check_branch
        %193 = sbr.rel (%p191) target = $region20
      $region19: #{tpu_custom_call.1} parent=5 // pred_region
        // Predicated region
        $region21: #{tpu_custom_call.1} parent=19 // pred_check
          %p194 = pneg %p54
        $region22: #{tpu_custom_call.1} parent=19 // pred_check_branch
          %196 = sbr.rel (%p194) target = $region24
        $region23: #{tpu_custom_call.1} parent=19 // pred_region
          %s197 = sand.u32 %s44, 1
          %s198 = scalar_lea.sflag [#allocation3], %s197
          %s199 = sand.u32 %s44, 1
          %s200 = smul.addr %s199, 16
          %s201 = scalar_lea.vmem [#allocation2], %s200
          %203 = vsyncadd %s198, 0
          %s204 = smul.addr %s27, 4
          %s205 = sadd.s32 %s28, %s204
          %s206 = smul.addr %s205, 4
          %s207 = scalar_lea.hbm %s0, %s206
          %s208 = sshll.u32 %s207, 4
          %s209 = int_to_ptr.hbm [resolvable:$true] %s208
          %s210 = sshll.u32 %s201, 4
          %s211 = int_to_ptr.vmem [resolvable:$true] %s210
          %216 = dma.hbm_to_vmem [thread:$0]  %s209, 256, %s211, %s198, 64, 64, 4
        $region24: #{tpu_custom_call.1} parent=19 // pred_fallthru
          _
        // Predicated region
        $region25: #{tpu_custom_call.1} parent=19 // pred_check
          %p217 = pneg %p80
        $region26: #{tpu_custom_call.1} parent=19 // pred_check_branch
          %219 = sbr.rel (%p217) target = $region28
        $region27: #{tpu_custom_call.1} parent=19 // pred_region
          %s220 = sand.u32 %s20, 1
          %s221 = scalar_lea.sflag [#allocation6], %s220
          %s222 = sand.u32 %s70, 1
          %s223 = smul.addr %s222, 16
          %s224 = scalar_lea.vmem [#allocation5], %s223
          %226 = vsyncadd %s221, 0
          %s227 = smul.addr %s27, 4
          %s228 = smul.addr %s227, 4
          %s229 = scalar_lea.hbm %s1, %s228
          %s230 = sshll.u32 %s229, 4
          %s231 = int_to_ptr.hbm [resolvable:$true] %s230
          %s232 = sshll.u32 %s224, 4
          %s233 = int_to_ptr.vmem [resolvable:$true] %s232
          %238 = dma.hbm_to_vmem [thread:$0]  %s231, 256, %s233, %s221, 64, 64, 4
        $region28: #{tpu_custom_call.1} parent=19 // pred_fallthru
          _
        // Predicated region
        $region29: #{tpu_custom_call.1} parent=19 // pred_check
          %p239 = pneg %p106
        $region30: #{tpu_custom_call.1} parent=19 // pred_check_branch
          %241 = sbr.rel (%p239) target = $region32
        $region31: #{tpu_custom_call.1} parent=19 // pred_region
          %s242 = sand.u32 %s20, 1
          %s243 = scalar_lea.sflag [#allocation6], %s242
          %s244 = sand.u32 %s96, 1
          %s245 = smul.addr %s244, 16
          %s246 = scalar_lea.vmem [#allocation7], %s245
          %248 = vsyncadd %s243, 0
          %s249 = smul.addr %s27, 4
          %s250 = smul.addr %s249, 4
          %s251 = scalar_lea.hbm %s2, %s250
          %s252 = sshll.u32 %s251, 4
          %s253 = int_to_ptr.hbm [resolvable:$true] %s252
          %s254 = sshll.u32 %s246, 4
          %s255 = int_to_ptr.vmem [resolvable:$true] %s254
          %260 = dma.hbm_to_vmem [thread:$0]  %s253, 256, %s255, %s243, 64, 64, 4
        $region32: #{tpu_custom_call.1} parent=19 // pred_fallthru
          _
      $region20: #{tpu_custom_call.1} parent=5 // pred_fallthru
        _
      %p261 = scmp.le.s32.totalorder 1, %s20
      %p262 = scmp.lt.s32.totalorder %s20, 3
      %p263 = pnand %p261, %p262
      %p264 = pneg %p263
      // Predicated region
      $region33: #{tpu_custom_call.1} parent=5 // pred_check
        _
      $region34: #{tpu_custom_call.1} parent=5 // pred_check_branch
        %266 = sbr.rel (%p263) target = $region36
      $region35: #{tpu_custom_call.1} parent=5 // pred_region
        %s267 = ssub.s32 %s20, 1
        %s268 = sand.u32 %s47, 1
        %s269 = scalar_lea.sflag [#allocation3], %s268
        %s270 = sand.u32 %s47, 1
        %s271 = smul.addr %s270, 16
        %s272 = scalar_lea.vmem [#allocation2], %s271
        // Predicated region
        $region37: #{tpu_custom_call.1} parent=35 // pred_check
          %p273 = pneg %p60
        $region38: #{tpu_custom_call.1} parent=35 // pred_check_branch
          %275 = sbr.rel (%p273) target = $region40
        $region39: #{tpu_custom_call.1} parent=35 // pred_region
          %277 = dma.done %s269, 256
        $region40: #{tpu_custom_call.1} parent=35 // pred_fallthru
          _
        %s278 = sand.u32 %s25, 1
        %s279 = scalar_lea.sflag [#allocation6], %s278
        %s280 = sand.u32 %s73, 1
        %s281 = smul.addr %s280, 16
        %s282 = scalar_lea.vmem [#allocation5], %s281
        // Predicated region
        $region41: #{tpu_custom_call.1} parent=35 // pred_check
          %p283 = pneg %p86
        $region42: #{tpu_custom_call.1} parent=35 // pred_check_branch
          %285 = sbr.rel (%p283) target = $region44
        $region43: #{tpu_custom_call.1} parent=35 // pred_region
          %287 = dma.done %s279, 256
        $region44: #{tpu_custom_call.1} parent=35 // pred_fallthru
          _
        %s288 = sand.u32 %s25, 1
        %s289 = scalar_lea.sflag [#allocation6], %s288
        %s290 = sand.u32 %s99, 1
        %s291 = smul.addr %s290, 16
        %s292 = scalar_lea.vmem [#allocation7], %s291
        // Predicated region
        $region45: #{tpu_custom_call.1} parent=35 // pred_check
          %p293 = pneg %p112
        $region46: #{tpu_custom_call.1} parent=35 // pred_check_branch
          %295 = sbr.rel (%p293) target = $region48
        $region47: #{tpu_custom_call.1} parent=35 // pred_region
          %297 = dma.done %s289, 256
        $region48: #{tpu_custom_call.1} parent=35 // pred_fallthru
          _
        // Predicated region
        $region49: #{tpu_custom_call.1} parent=35 // pred_check
          %p298 = pneg %p133
        $region50: #{tpu_custom_call.1} parent=35 // pred_check_branch
          %300 = sbr.rel (%p298) target = $region52
        $region51: #{tpu_custom_call.1} parent=35 // pred_region
          %302 = dma.done [#allocation9], 256
        $region52: #{tpu_custom_call.1} parent=35 // pred_fallthru
          _
        %s303 = sand.u32 %s47, 1
        %s304 = scalar_lea.sflag [#allocation3], %s303
        %s305 = sand.u32 %s47, 1
        %s306 = smul.addr %s305, 16
        %s307 = scalar_lea.vmem [#allocation2], %s306
        %p308 = pneg %p60
        %p309 = pneg %p57
        %s310 = sand.u32 %s25, 1
        %s311 = scalar_lea.sflag [#allocation6], %s310
        %s312 = sand.u32 %s73, 1
        %s313 = smul.addr %s312, 16
        %s314 = scalar_lea.vmem [#allocation5], %s313
        %p315 = pneg %p86
        %p316 = pneg %p83
        %s317 = sand.u32 %s25, 1
        %s318 = scalar_lea.sflag [#allocation6], %s317
        %s319 = sand.u32 %s99, 1
        %s320 = smul.addr %s319, 16
        %s321 = scalar_lea.vmem [#allocation7], %s320
        %p322 = pneg %p112
        %p323 = pneg %p109
        %p324 = pneg %p133
        %p325 = pneg %p130
        %p326 = pneg %p161
        %p327 = pneg %p158
        %s328 = sand.u32 %s148, 1
        %s329 = scalar_lea.sflag [#allocation4], %s328
        %s330 = sand.u32 %s148, 1
        %s331 = smul.addr %s330, 8
        %s332 = scalar_lea.vmem [#allocation10], %s331
        loop: start=0, step=1, limit=4
        $region53: #{tpu_custom_call.1} parent=35 // loop_pre_header
          _
        $region54: #{tpu_custom_call.1} parent=35 // loop_header
          %s335 = sphi 0, %s339
          %p336 = scmp.ge.s32.totalorder %s335, 4
          %v340 = vphi 0.0, %v425
        $region55: #{tpu_custom_call.1} parent=35 // loop_header_branch
          %338 = sbr.rel (%p336) target = $region59
        $region56: #{tpu_custom_call.1} parent=35 // loop_body
          %s341 = smul.addr %s335, 4
          %s342 = scalar_lea.vmem %s272, %s341 [#allocation2]
          %v343 = vld [vmem:[%s342] sm:$0xf]
          %s344 = smul.addr %s335, 4
          %s345 = scalar_lea.vmem %s282, %s344 [#allocation5]
          %v346 = vld [vmem:[%s345] sm:$0xf]
          %s347 = smul.addr %s335, 4
          %s348 = scalar_lea.vmem %s292, %s347 [#allocation7]
          %v349 = vld [vmem:[%s348] sm:$0xf]
          %vm350 = vcmask 64512
          %v352 = vsel %vm350, %v343, 0
          %v355 = vsel %vm350, %v346, 0
          %357 = vmatpush.bf16.xpose.msra.mxu0 0
          %358 = vmatpush.bf16.xpose.msra.mxu0 0
          %359 = vmatpush.bf16.xpose.msra.mxu0 0
          %360 = vmatpush.bf16.xpose.msra.mxu0 0
          %361 = vmatpush.bf16.xpose.msra.mxu0 0
          %362 = vmatpush.bf16.xpose.msra.mxu0 0
          %363 = vmatpush.bf16.xpose.msra.mxu0 0
          %364 = vmatpush.bf16.xpose.msra.mxu0 %v355
          %365 = vmatmul.bf16.gmra.mxu0 %v352
          %v366 = vpop.f32.mrf.mxu0
          %v367 = vadd.f32 0.0, %v366
          %v368 = vpop.f32.mrf.mxu0
          %369 = vdwg.mxu0
          %v370 = vsel %vm350, %v367, -inf
          %371 = vmax.xlane.f32.xlu0 %v370
          %v372 = vpop.xlane.xlu0 %371
          %v373 = vsub.f32 %v367, %v372
          %v374 = vmul.f32 %v373, 1.442695
          %v375 = vpow.pop %v374
          %v376 = vsel %vm350, %v375, 0.0
          %377 = vadd.xlane.f32.xlu0 %v376
          %v378 = vpop.xlane.xlu0 %377
          %v379 = vpack.c.bf16 %v375, %v375
          %v381 = vsel %vm350, %v379, 0
          %vm383 = vcmask 1043456
          %v385 = vsel %vm383, %v349, 0
          %387 = vmatpush.bf16.msra.mxu0 0
          %388 = vmatpush.bf16.msra.mxu0 0
          %389 = vmatpush.bf16.msra.mxu0 0
          %390 = vmatpush.bf16.msra.mxu0 0
          %391 = vmatpush.bf16.msra.mxu0 0
          %392 = vmatpush.bf16.msra.mxu0 0
          %393 = vmatpush.bf16.msra.mxu0 0
          %394 = vmatpush.bf16.msra.mxu0 %v385
          %395 = vmatmul.bf16.gmra.mxu0 %v381
          %v396 = vpop.f32.mrf.mxu0
          %v397 = vadd.f32 0.0, %v396
          %v398 = vpop.f32.mrf.mxu0
          %399 = vdwg.mxu0
          %v400 = vrcp.pop %v378
          %v401 = vmul.f32 %v397, %v400
          %v402 = vpack.c.bf16 %v401, %v401
          %s403 = smul.addr %s335, 4
          %s404 = scalar_lea.vmem [#allocation8], %s403
          %v405 = vld [vmem:[%s404] sm:$0xf]
          %v407 = vsel %vm350, %v402, 0
          %v410 = vsel %vm383, %v405, 0
          %412 = vmatpush.bf16.msra.mxu0 0
          %413 = vmatpush.bf16.msra.mxu0 0
          %414 = vmatpush.bf16.msra.mxu0 0
          %415 = vmatpush.bf16.msra.mxu0 0
          %416 = vmatpush.bf16.msra.mxu0 0
          %417 = vmatpush.bf16.msra.mxu0 0
          %418 = vmatpush.bf16.msra.mxu0 0
          %419 = vmatpush.bf16.msra.mxu0 %v410
          %420 = vmatmul.bf16.gmra.mxu0 %v407
          %v421 = vpop.f32.mrf.mxu0
          %v422 = vadd.f32 0.0, %v421
          %v423 = vpop.f32.mrf.mxu0
          %424 = vdwg.mxu0
          %v425 = vadd.f32 %v340, %v422
        $region57: #{tpu_custom_call.1} parent=35 // loop_footer
          %s339 = sadd.s32 1, %s335
        $region58: #{tpu_custom_call.1} parent=35 // loop_footer_branch
          %334 = sbr.rel target = $region54
        $region59: #{tpu_custom_call.1} parent=35 // loop_exit
          _
        %vm426 = vcmask 261120
        %427 = vst.msk [vmem:[%s332] sm:$0xff] %vm426, %v340
        %s428 = sand.u32 %s148, 1
        %s429 = scalar_lea.sflag [#allocation4], %s428
        %s430 = sand.u32 %s148, 1
        %s431 = smul.addr %s430, 8
        %s432 = scalar_lea.vmem [#allocation10], %s431
        // Predicated region
        $region60: #{tpu_custom_call.1} parent=35 // pred_check
          %p433 = pneg %p158
        $region61: #{tpu_custom_call.1} parent=35 // pred_check_branch
          %435 = sbr.rel (%p433) target = $region63
        $region62: #{tpu_custom_call.1} parent=35 // pred_region
          %437 = vsyncadd %s429, 0
          %s438 = sadd.s32 %s30, %s29
          %s439 = smul.addr %s438, 8
          %s440 = scalar_lea.hbm %s4, %s439
          %s442 = sshll.u32 %s432, 4
          %s443 = int_to_ptr.vmem [resolvable:$true] %s442
          %s444 = sshll.u32 %s440, 4
          %s445 = int_to_ptr.hbm [resolvable:$true] %s444
          %447 = dma.vmem_to_hbm [thread:$0]  %s443, 128, %s445, %s429
        $region63: #{tpu_custom_call.1} parent=35 // pred_fallthru
          _
      $region36: #{tpu_custom_call.1} parent=5 // pred_fallthru
        _
      %p448 = scmp.le.s32.totalorder 2, %s20
      // Predicated region
      $region64: #{tpu_custom_call.1} parent=5 // pred_check
        %p449 = pneg %p448
      $region65: #{tpu_custom_call.1} parent=5 // pred_check_branch
        %451 = sbr.rel (%p449) target = $region67
      $region66: #{tpu_custom_call.1} parent=5 // pred_region
        %s452 = ssub.s32 %s20, 2
        // Predicated region
        $region68: #{tpu_custom_call.1} parent=66 // pred_check
          %p453 = pneg %p164
        $region69: #{tpu_custom_call.1} parent=66 // pred_check_branch
          %455 = sbr.rel (%p453) target = $region71
        $region70: #{tpu_custom_call.1} parent=66 // pred_region
          %s456 = sand.u32 %s149, 1
          %s457 = scalar_lea.sflag [#allocation4], %s456
          %s458 = sand.u32 %s149, 1
          %s459 = smul.addr %s458, 8
          %s460 = scalar_lea.vmem [#allocation10], %s459
          %462 = dma.done %s457, 128
        $region71: #{tpu_custom_call.1} parent=66 // pred_fallthru
          _
      $region67: #{tpu_custom_call.1} parent=5 // pred_fallthru
        _
    $region6: #{tpu_custom_call.1} parent=1 // loop_footer
      %s24 = sadd.s32 1, %s20
    $region7: #{tpu_custom_call.1} parent=1 // loop_footer_branch
      %19 = sbr.rel target = $region3
    $region8: #{tpu_custom_call.1} parent=1 // loop_exit
      _
    %463 = vsyncpa [#allocation3], 1
    %s464 = scalar_lea.sflag [#allocation3], 1
    %465 = vsyncpa %s464, 1
    %466 = vsyncpa [#allocation6], 1
    %s467 = scalar_lea.sflag [#allocation6], 1
    %468 = vsyncpa %s467, 1
    %469 = vsyncpa [#allocation9], 1
    %470 = vsyncpa [#allocation4], 1
    %s471 = scalar_lea.sflag [#allocation4], 1
    %472 = vsyncpa %s471, 1

</llo_original>
